<compile_context>
chip_gen: v6e
topology: v6e:2x2x1
jax: 0.10.0
libtpu: 0.0.40
codegen_flags: <defaults>
</compile_context>

<pallas_src>
from functools import partial
from typing import Dict, List

import jax
import jax.numpy as jnp
from jax.experimental import pallas as pl
from jax.experimental.pallas import tpu as pltpu

LANE = 128
SUBLANE = 8
_VMEM_LIMIT_BYTES = 32 * 1024 * 1024  # safe on v5e/v6e (128 MiB) and v7x (64 MiB)


def _round_up(x: int, m: int) -> int:
    return ((x + m - 1) // m) * m


def _row_align(itemsize: int) -> int:
    """Sublane alignment per dtype: f32 -> 8, bf16 -> 16, int8/fp8 -> 32.

    Sub-32-bit dtypes pack along sublanes; aligning row tiles to the packed
    sublane count keeps stores unmasked for any activation dtype.
    """
    return max(SUBLANE, (SUBLANE * 4) // max(int(itemsize), 1))


# ----------------------------------------------------------------------------
# Pallas kernels
# ----------------------------------------------------------------------------
def _abs_kernel(x_ref, o_ref):
    """Diagonal-covariance path, fused analytically:

    cov   = diag_embed(scale ** 2)
    scale = sqrt(diagonal(cov))  ==  |scale|

    The dense covariance is never materialized (it would be discarded anyway).
    """
    o_ref[...] = jnp.abs(x_ref[...])


def _cov_kernel(x_ref, o_ref, *, d: int):
    """Full-covariance path: cov = L @ L^T (batched matmul on the MXU).

    Blocks are lane-dense (tb, d*d); the (tb, d, d) view only exists inside the
    kernel (small VMEM-local relayout) so every HBM-facing load/store is a full
    128-lane vld/vst.
    """
    tb = x_ref.shape[0]
    L = x_ref[...].reshape(tb, d, d)
    # TODO(synk): at small d the serialized per-batch MXU pushes may become the
    # binding slot; a VPU j-loop of broadcast-FMAs is the alternative — needs a
    # bundle dump to decide, so the standard MXU einsum is kept here.
    cov = jnp.einsum("bij,bkj->bik", L, L, preferred_element_type=jnp.float32)
    o_ref[...] = cov.reshape(tb, d * d).astype(o_ref.dtype)


# ----------------------------------------------------------------------------
# pallas_call wrappers
# ----------------------------------------------------------------------------
def diag_scale(scale: jnp.ndarray,
               *,
               block_bytes: int = 1 << 20,
               min_pallas_elements: int = 1 << 20,
               force_pallas: bool = False) -> jnp.ndarray:
    """|scale| via a lane-dense, batch-tiled elementwise kernel.

    The input is flattened to a (rows, 128) view so every store is an unmasked
    full-lane vst.  Padding/slicing only happens when n is not a multiple of 128,
    the grid allows a partial trailing block (no padding to tile multiples), and
    tiny inputs short-circuit to plain jnp.abs (dispatch overhead >> HBM traffic).
    """
    n = int(scale.size)
    if n == 0:
        return scale
    if not force_pallas and n < min_pallas_elements:
        # XLA fuses a bare |x| into neighbors for free; kernel launch + pad/slice
        # dispatches would dominate at these sizes.
        return jnp.abs(scale)

    orig_shape = scale.shape
    dtype = scale.dtype
    itemsize = int(scale.dtype.itemsize)
    align = _row_align(itemsize)

    flat = jnp.ravel(scale)
    pad = (-n) % LANE
    if pad:
        flat = jnp.pad(flat, (0, pad))  # only when n % 128 != 0
    rows = flat.size // LANE
    x2d = flat.reshape(rows, LANE)

    if rows <= align:
        tile_rows = rows  # single full-extent block (divisibility waived)
    else:
        # ~1 MiB blocks: big enough to hide the ~0.35 us per-step overhead at
        # v7x's ~3.2 TB/s, tiny against the double-buffered VMEM budget.
        tile_rows = max(align, (block_bytes // (LANE * itemsize)) // align * align)
        if rows >= 2 * align:
            # guarantee >= 2 grid steps so double-buffering + v7x megacore engage
            tile_rows = min(tile_rows, _round_up(pl.cdiv(rows, 2), align))
        tile_rows = min(tile_rows, _round_up(rows, align))

    grid = pl.cdiv(rows, tile_rows)  # partial trailing block handled by Pallas

    out = pl.pallas_call(
        _abs_kernel,
        out_shape=jax.ShapeDtypeStruct((rows, LANE), dtype),
        grid_spec=pltpu.PrefetchScalarGridSpec(
            num_scalar_prefetch=0,
            grid=(grid,),
            in_specs=[pl.BlockSpec((tile_rows, LANE), lambda i: (i, 0))],
            out_specs=pl.BlockSpec((tile_rows, LANE), lambda i: (i, 0)),
        ),
        compiler_params=pltpu.CompilerParams(
            dimension_semantics=("parallel",),
            vmem_limit_bytes=_VMEM_LIMIT_BYTES,
        ),
    )(x2d)

    flat_out = out.reshape(-1)
    if pad:
        flat_out = flat_out[:n]
    return flat_out.reshape(orig_shape)


def full_covariance(scale_tril: jnp.ndarray,
                    *,
                    block_bytes: int = 2 << 20,
                    max_batch_tile: int = 512) -> jnp.ndarray:
    """cov = scale_tril @ scale_tril^T, batch-tiled with lane-dense (B, D*D) blocks.

    The wrapper-side (B, D, D) -> (B, D*D) reshape is free on contiguous HBM; the
    kernel sees/writes lane-dense slabs and only relayouts locally.  The batch tile
    is derived from a byte budget, dtype-aware alignment, capped at 512 (<= 16 MiB
    double-buffered on v7x), and at half the batch so the grid has >= 2 steps.
    """
    B, D, D2 = scale_tril.shape
    assert D == D2, "scale_tril must be (B, D, D)"
    dd = D * D
    dtype = scale_tril.dtype
    itemsize = int(dtype.itemsize)
    align = _row_align(itemsize)

    x = scale_tril.reshape(B, dd)  # free relabel of contiguous HBM

    if B <= align:
        tb = B  # single full-extent block (divisibility waived)
    else:
        per_row = dd * itemsize  # one lane-dense input row == one output row
        tb = max(align, (block_bytes // max(per_row, 1)) // align * align)
        tb = min(tb, max_batch_tile)
        if B >= 2 * align:
            tb = min(tb, _round_up(pl.cdiv(B, 2), align))  # >= 2 grid steps
        tb = min(tb, _round_up(B, align))
    grid = pl.cdiv(B, tb)  # partial trailing block handled by Pallas

    cov = pl.pallas_call(
        partial(_cov_kernel, d=D),
        out_shape=jax.ShapeDtypeStruct((B, dd), dtype),
        grid_spec=pltpu.PrefetchScalarGridSpec(
            num_scalar_prefetch=0,
            grid=(grid,),
            in_specs=[pl.BlockSpec((tb, dd), lambda i: (i, 0))],
            out_specs=pl.BlockSpec((tb, dd), lambda i: (i, 0)),
        ),
        compiler_params=pltpu.CompilerParams(
            dimension_semantics=("parallel",),
            vmem_limit_bytes=_VMEM_LIMIT_BYTES,
        ),
    )(x)
    return cov.reshape(B, D, D)


# ----------------------------------------------------------------------------
# Module equivalent
# ----------------------------------------------------------------------------
class BaseProjectionPallas:
    """JAX/Pallas equivalent of fancy_rl BaseProjection (no learnable params)."""

    _VALID_IN = {"loc", "scale", "scale_tril", "old_loc", "old_scale", "old_scale_tril"}
    _VALID_OUT = {"loc", "scale", "scale_tril"}

    def __init__(self, in_keys: List[str], out_keys: List[str],
                 trust_region_coeff: float = 1.0, mean_bound: float = 0.01,
                 cov_bound: float = 0.01, contextual_std: bool = True):
        self._validate_in_keys(in_keys)
        self._validate_out_keys(out_keys)
        self.in_keys = in_keys
        self.out_keys = out_keys
        self.trust_region_coeff = trust_region_coeff
        self.mean_bound = mean_bound
        self.cov_bound = cov_bound
        self.full_cov = "scale_tril" in in_keys
        self.contextual_std = contextual_std

    def _validate_in_keys(self, keys):
        if not set(keys).issubset(self._VALID_IN):
            raise ValueError(f"Invalid in_keys: {keys}")
        if "loc" not in keys or "old_loc" not in keys:
            raise ValueError("Both 'loc' and 'old_loc' must be included in in_keys")
        if ("scale" in keys) != ("old_scale" in keys) or \
           ("scale_tril" in keys) != ("old_scale_tril" in keys):
            raise ValueError("in_keys must have matching scale/old_scale pairs")

    def _validate_out_keys(self, keys):
        if not set(keys).issubset(self._VALID_OUT):
            raise ValueError(f"Invalid out_keys: {keys}")
        if "loc" not in keys:
            raise ValueError("'loc' must be included in out_keys")
        if "scale" not in keys and "scale_tril" not in keys:
            raise ValueError("Either 'scale' or 'scale_tril' must be in out_keys")

    # ---- torch BaseProjection helper equivalents ---------------------------
    def _calc_covariance(self, params: Dict[str, jnp.ndarray]) -> jnp.ndarray:
        if not self.full_cov:
            # diag_embed(scale ** 2); only subclasses need the dense form, so a
            # simple fused XLA broadcast is enough here.
            s2 = params["scale"] ** 2
            eye = jnp.eye(s2.shape[-1], dtype=s2.dtype)
            return s2[..., :, None] * eye
        # Lane-dense Pallas kernel: cov = L @ L^T on the MXU.
        return full_covariance(params["scale_tril"])

    def _calc_scale_or_scale_tril(self, cov: jnp.ndarray) -> jnp.ndarray:
        if not self.full_cov:
            return jnp.sqrt(jnp.diagonal(cov, axis1=-2, axis2=-1))
        # TODO(synk): torch.linalg.cholesky has no clean Pallas TPU equivalent;
        # factorization uses plain JAX (XLA's batched Cholesky).
        return jnp.linalg.cholesky(cov)

    # ---- forward ------------------------------------------------------------
    def forward(self, tensordict: Dict[str, jnp.ndarray]) -> Dict[str, jnp.ndarray]:
        policy_params, old_policy_params = {}, {}
        for key in self.in_keys:
            if key not in tensordict:
                raise KeyError(f"Key '{key}' not found in tensordict. "
                               f"Available keys: {list(tensordict.keys())}")
            if key.startswith("old_"):
                old_policy_params[key[4:]] = tensordict[key]
            else:
                policy_params[key] = tensordict[key]
        return self.project(policy_params, old_policy_params)

    def project(self, policy_params, old_policy_params):
        # TODO(synk): BaseProjection.project is abstract (concrete subclasses define
        # KL/W2/Frobenius math). Instantiated here as the exact identity projection.
        loc = policy_params["loc"]  # passthrough — never routed through HBM/kernel
        if not self.full_cov:
            # _calc_covariance followed by _calc_scale_or_scale_tril composes to
            # sqrt(diag(diag_embed(scale^2))) == |scale|; fused into one kernel
            # (with an XLA fast path for tiny inputs).
            return {"loc": loc, "scale": diag_scale(policy_params["scale"])}
        # cholesky(L @ L^T) == L but squares the condition number; for the identity
        # projection pass scale_tril through exactly.  Subclasses needing the dense
        # covariance call self._calc_covariance (the Pallas L @ L^T kernel).
        return {"loc": loc, "scale_tril": policy_params["scale_tril"]}

    def get_trust_region_loss(self, policy_params, proj_policy_params):
        # TODO(synk): abstract in the torch base class; defined by subclasses.
        raise NotImplementedError


# ----------------------------------------------------------------------------
# Demo / correctness check
# ----------------------------------------------------------------------------
if __name__ == "__main__":
    key = jax.random.PRNGKey(0)
    k1, k2, k3, k4, k5, k6, k7 = jax.random.split(key, 7)

    B, D = 8, 32
    loc = jax.random.normal(k1, (B, D), jnp.float32)
    scale = jnp.abs(jax.random.normal(k2, (B, D), jnp.float32)) + 0.1
    old_loc = jax.random.normal(k3, (B, D), jnp.float32)
    old_scale = jnp.abs(jax.random.normal(k4, (B, D), jnp.float32)) + 0.1

    # --- Diagonal-covariance projection --------------------------------------
    proj_diag = BaseProjectionPallas(
        in_keys=["loc", "scale", "old_loc", "old_scale"],
        out_keys=["loc", "scale"],
    )
    td = {"loc": loc, "scale": scale, "old_loc": old_loc, "old_scale": old_scale}
    out = proj_diag.forward(td)
    jax.block_until_ready(out)
    assert jnp.allclose(out["loc"], loc, atol=1e-6)
    assert jnp.allclose(out["scale"], scale, rtol=1e-6, atol=1e-6)

    # Base-class helper round trip (matches torch _calc_* semantics).
    s_back = proj_diag._calc_scale_or_scale_tril(
        proj_diag._calc_covariance({"scale": scale}))
    assert jnp.allclose(s_back, scale, rtol=1e-6, atol=1e-6)

    # Exercise the Pallas |x| kernel directly: non-lane-multiple size, padded tail,
    # 2-step grid with a partial trailing block.
    big = jax.random.normal(k5, (160, 33), jnp.float32)
    got = diag_scale(big, force_pallas=True)
    jax.block_until_ready(got)
    assert got.shape == big.shape
    assert jnp.allclose(got, jnp.abs(big))

    # --- Full-covariance projection (scale_tril path) ------------------------
    Bc = 100  # not a multiple of the batch tile -> exercises the partial block
    A = jax.random.normal(k6, (Bc, D, D), jnp.float32) * 0.1
    diag = jnp.abs(jnp.diagonal(A, axis1=-2, axis2=-1)) + 0.5
    scale_tril = jnp.tril(A, k=-1) + diag[:, :, None] * jnp.eye(D, dtype=A.dtype)[None]

    # Direct kernel check: cov = L @ L^T (lane-dense (B, D*D) blocks, 2-step grid).
    cov_kernel = full_covariance(scale_tril)
    jax.block_until_ready(cov_kernel)
    cov_ref = jnp.einsum("bij,bkj->bik", scale_tril, scale_tril)
    assert jnp.allclose(cov_kernel, cov_ref, rtol=1e-5, atol=1e-5)

    proj_full = BaseProjectionPallas(
        in_keys=["loc", "scale_tril", "old_loc", "old_scale_tril"],
        out_keys=["loc", "scale_tril"],
    )
    loc_f = jax.random.normal(k7, (Bc, D), jnp.float32)
    td_full = {"loc": loc_f, "scale_tril": scale_tril,
               "old_loc": loc_f, "old_scale_tril": scale_tril}
    out_full = proj_full.forward(td_full)
    jax.block_until_ready(out_full)
    assert jnp.allclose(out_full["loc"], loc_f, atol=1e-6)
    assert jnp.allclose(out_full["scale_tril"], scale_tril)  # exact passthrough

    # Base-class helper round trip: cholesky(kernel cov) recovers L.
    chol = proj_full._calc_scale_or_scale_tril(
        proj_full._calc_covariance({"scale_tril": scale_tril}))
    jax.block_until_ready(chol)
    assert jnp.allclose(chol, scale_tril, rtol=1e-4, atol=1e-4)

    print("KERNEL_OK")
</pallas_src>

<mosaic_0001>
module attributes {stable_mosaic.version = 11 : i64} {
  func.func @_abs_kernel(%arg0: i32, %arg1: memref<24x128xf32, #tpu.memory_space<vmem>>, %arg2: memref<24x128xf32, #tpu.memory_space<vmem>>) attributes {dimension_semantics = [#tpu.dimension_semantics<parallel>], iteration_bounds = array<i64: 2>, scalar_prefetch = 0 : i64, scratch_operands = 0 : i64, tpu.core_type = #tpu.core_type<tc>, window_params = [{transform_indices = @transform_0, window_bounds = array<i64: 24, 128>}, {transform_indices = @transform_1, window_bounds = array<i64: 24, 128>}]} {
    %c0 = arith.constant 0 : index
    %c0_0 = arith.constant 0 : index
    %0 = vector.load %arg1[%c0, %c0_0] : memref<24x128xf32, #tpu.memory_space<vmem>>, vector<24x128xf32>
    %1 = math.absf %0 : vector<24x128xf32>
    %c0_1 = arith.constant 0 : index
    %c0_2 = arith.constant 0 : index
    %2 = vector.load %arg2[%c0_1, %c0_2] : memref<24x128xf32, #tpu.memory_space<vmem>>, vector<24x128xf32>
    tpu.vector_store %arg2[%c0_1, %c0_2], %1 {strides = array<i32>} : memref<24x128xf32, #tpu.memory_space<vmem>>, vector<24x128xf32>,
    return
  }
  func.func @transform_0(%arg0: i32) -> (i32, i32) {
    %c0_i32 = arith.constant 0 : i32
    %c0_i32_0 = arith.constant 0 : i32
    return %arg0, %c0_i32 : i32, i32
  }
  func.func @transform_1(%arg0: i32) -> (i32, i32) {
    %c0_i32 = arith.constant 0 : i32
    %c0_i32_0 = arith.constant 0 : i32
    return %arg0, %c0_i32 : i32, i32
  }
}

</mosaic_0001>

<llo_original>
// kernel: tpu_custom_call.1
$region0: #{tpu_custom_call.1}
  #allocation0 [shape = 'u32[]', space=smem, size = 0x4, offset = 0x4, fixed_abs, tag = 'smem constant byte address 0x4 - core index']
  #allocation1 [shape = 'u32[144,128]{1,0:T(1,128)}', space=vmem, size = 0x12000, scoped, tag = 'internal scratch']
  %s0 = inlined_call_operand.hbm [shape: f32[42,128], index: 0, kind: input, shape index: {}]
  %s1 = inlined_call_operand.hbm [shape: f32[42,128], index: 1, kind: output, shape index: {}]
  %s2 = sld [smem:[#allocation0]]
  $region41: #{tpu_custom_call.1} parent=0
    _
  %s4 = ssub.s32 1, %s2
  %s5 = scalar_select 0, %s4, %s2
  $region1: #{tpu_custom_call.1} parent=0
    #allocation2 [shape = 'u8[24576]{0}', space=vmem, size = 0x6000, scoped, tag = 'input window, operand 0']
    #allocation3 [shape = 's32[2]{0}', space=sflag, size = 0x8, scoped, tag = 'scoped memory for tpu_custom_call.1']
    #allocation4 [shape = 's32[2]{0}', space=sflag, size = 0x8, scoped, tag = 'scoped memory for tpu_custom_call.1']
    #allocation5 [shape = 'u8[24576]{0}', space=vmem, size = 0x6000, scoped, tag = 'output window, operand 0']
    %6 = vsyncpa [#allocation3], 0
    %s7 = scalar_lea.sflag [#allocation3], 1
    %8 = vsyncpa %s7, 0
    %9 = vsyncpa [#allocation4], 0
    %s10 = scalar_lea.sflag [#allocation4], 1
    %11 = vsyncpa %s10, 0
    loop: start=0, step=1, limit=4
    $region2: #{tpu_custom_call.1} parent=1 // loop_pre_header
      _
    $region3: #{tpu_custom_call.1} parent=1 // loop_header
      %s13 = sphi 0, %s17
      %p14 = scmp.ge.s32.totalorder %s13, 4
      %s23 = sphi 0, %s25
      %s26 = sphi 0, %s23
      %s27 = sphi 0, %s26
      %s43 = sphi 0, %s27
      %s49 = sphi 0, %s51
      %s52 = sphi 0, %s49
      %s53 = sphi 0, %s52
      %s69 = sphi 0, %s53
    $region4: #{tpu_custom_call.1} parent=1 // loop_header_branch
      %16 = sbr.rel (%p14) target = $region8
    $region5: #{tpu_custom_call.1} parent=1 // loop_body
      %s18 = ssub.s32 %s13, 1
      %s19 = ssub.s32 %s13, 2
      %s20 = sadd.s32 %s13, 1
      %s21 = ssub.s32 %s13, %s20
      %p22 = scmp.eq.s32.totalorder %s21, 0
      %s24 = sadd.s32 %s23, 1
      %s25 = scalar_select %p22, %s23, %s24
      %p28 = pneg %p22
      %p29 = scmp.eq.s32.totalorder %s13, 1
      %p30 = por %p28, %p29
      %p31 = scmp.ne.s32.totalorder %s23, %s26
      %p32 = scmp.eq.s32.totalorder %s13, 0
      %p33 = por %p31, %p32
      %p34 = scmp.ne.s32.totalorder %s23, %s26
      %p35 = scmp.eq.s32.totalorder %s18, 1
      %p36 = por %p34, %p35
      %p37 = scmp.ne.s32.totalorder %s26, %s27
      %p38 = scmp.eq.s32.totalorder %s18, 0
      %p39 = por %p37, %p38
      %p40 = scmp.ne.s32.totalorder %s26, %s27
      %p41 = scmp.eq.s32.totalorder %s19, 1
      %p42 = por %p40, %p41
      %p44 = scmp.ne.s32.totalorder %s27, %s43
      %p45 = scmp.eq.s32.totalorder %s19, 0
      %p46 = por %p44, %p45
      %s47 = ssub.s32 %s13, %s20
      %p48 = scmp.eq.s32.totalorder %s47, 0
      %s50 = sadd.s32 %s49, 1
      %s51 = scalar_select %p48, %s49, %s50
      %p54 = pneg %p48
      %p55 = scmp.eq.s32.totalorder %s13, 1
      %p56 = por %p54, %p55
      %p57 = scmp.ne.s32.totalorder %s49, %s52
      %p58 = scmp.eq.s32.totalorder %s13, 0
      %p59 = por %p57, %p58
      %p60 = scmp.ne.s32.totalorder %s49, %s52
      %p61 = scmp.eq.s32.totalorder %s18, 1
      %p62 = por %p60, %p61
      %p63 = scmp.ne.s32.totalorder %s52, %s53
      %p64 = scmp.eq.s32.totalorder %s18, 0
      %p65 = por %p63, %p64
      %p66 = scmp.ne.s32.totalorder %s52, %s53
      %p67 = scmp.eq.s32.totalorder %s19, 1
      %p68 = por %p66, %p67
      %p70 = scmp.ne.s32.totalorder %s53, %s69
      %p71 = scmp.eq.s32.totalorder %s19, 0
      %p72 = por %p70, %p71
      %p73 = scmp.le.s32.totalorder 1, %s13
      %p74 = scmp.lt.s32.totalorder %s13, 3
      %p75 = pnand %p73, %p74
      %p76 = pneg %p75
      // Predicated region
      $region9: #{tpu_custom_call.1} parent=5 // pred_check
        _
      $region10: #{tpu_custom_call.1} parent=5 // pred_check_branch
        %78 = sbr.rel (%p75) target = $region12
      $region11: #{tpu_custom_call.1} parent=5 // pred_region
        %s79 = ssub.s32 %s13, 1
      $region12: #{tpu_custom_call.1} parent=5 // pred_fallthru
        _
      %p80 = scmp.lt.s32.totalorder %s13, 2
      // Predicated region
      $region13: #{tpu_custom_call.1} parent=5 // pred_check
        %p81 = pneg %p80
      $region14: #{tpu_custom_call.1} parent=5 // pred_check_branch
        %83 = sbr.rel (%p81) target = $region16
      $region15: #{tpu_custom_call.1} parent=5 // pred_region
        // Predicated region
        $region17: #{tpu_custom_call.1} parent=15 // pred_check
          %p84 = pneg %p33
        $region18: #{tpu_custom_call.1} parent=15 // pred_check_branch
          %86 = sbr.rel (%p84) target = $region20
        $region19: #{tpu_custom_call.1} parent=15 // pred_region
          %s87 = sand.u32 %s23, 1
          %s88 = scalar_lea.sflag [#allocation3], %s87
          %s89 = sand.u32 %s23, 1
          %s90 = smul.addr %s89, 24
          %s91 = scalar_lea.vmem [#allocation2], %s90
          %s92 = smul.u32 3, %s13
          %s94 = ssub.s32 384, 384
          %95 = vsyncadd %s88, %s94
          %s96 = smul.addr %s92, 128
          %s97 = scalar_lea.hbm %s0, %s96
          %s98 = sshll.u32 %s91, 4
          %s99 = int_to_ptr.vmem [resolvable:$true] %s98
          %104 = dma.hbm_to_vmem [thread:$0]  %s97, 384, %s99, %s88, 128, 128, 8
        $region20: #{tpu_custom_call.1} parent=15 // pred_fallthru
          _
      $region16: #{tpu_custom_call.1} parent=5 // pred_fallthru
        _
      %p105 = scmp.le.s32.totalorder 1, %s13
      %p106 = scmp.lt.s32.totalorder %s13, 3
      %p107 = pnand %p105, %p106
      %p108 = pneg %p107
      // Predicated region
      $region21: #{tpu_custom_call.1} parent=5 // pred_check
        _
      $region22: #{tpu_custom_call.1} parent=5 // pred_check_branch
        %110 = sbr.rel (%p107) target = $region24
      $region23: #{tpu_custom_call.1} parent=5 // pred_region
        %s111 = ssub.s32 %s13, 1
        %s112 = sand.u32 %s26, 1
        %s113 = scalar_lea.sflag [#allocation3], %s112
        %s114 = sand.u32 %s26, 1
        %s115 = smul.addr %s114, 24
        %s116 = scalar_lea.vmem [#allocation2], %s115
        // Predicated region
        $region25: #{tpu_custom_call.1} parent=23 // pred_check
          %p117 = pneg %p39
        $region26: #{tpu_custom_call.1} parent=23 // pred_check_branch
          %119 = sbr.rel (%p117) target = $region28
        $region27: #{tpu_custom_call.1} parent=23 // pred_region
          %120 = dma.done %s113, 384
        $region28: #{tpu_custom_call.1} parent=23 // pred_fallthru
          _
        %s121 = sand.u32 %s26, 1
        %s122 = scalar_lea.sflag [#allocation3], %s121
        %s123 = sand.u32 %s26, 1
        %s124 = smul.addr %s123, 24
        %s125 = scalar_lea.vmem [#allocation2], %s124
        %p126 = pneg %p39
        %p127 = pneg %p36
        %p128 = pneg %p65
        %p129 = pneg %p62
        %s130 = sand.u32 %s52, 1
        %s131 = scalar_lea.sflag [#allocation4], %s130
        %s132 = sand.u32 %s52, 1
        %s133 = smul.addr %s132, 24
        %s134 = scalar_lea.vmem [#allocation5], %s133
        %s135 = smul.u32 3, %s18
        %s136 = smul.u32 3, %s18
        %v137 = vld [vmem:[%s116] sm:$0xff]
        %v138 = vld [vmem:[%s116 + $0x8] sm:$0xff]
        %v139 = vld [vmem:[%s116 + $0x10] sm:$0xff]
        %v140 = vand.u32 2147483647, %v137
        %v141 = vand.u32 2147483647, %v138
        %v142 = vand.u32 2147483647, %v139
        %143 = vst [vmem:[%s134] sm:$0xff] %v140
        %144 = vst [vmem:[%s134 + $0x8] sm:$0xff] %v141
        %145 = vst [vmem:[%s134 + $0x10] sm:$0xff] %v142
        %s146 = sand.u32 %s52, 1
        %s147 = scalar_lea.sflag [#allocation4], %s146
        %s148 = sand.u32 %s52, 1
        %s149 = smul.addr %s148, 24
        %s150 = scalar_lea.vmem [#allocation5], %s149
        // Predicated region
        $region29: #{tpu_custom_call.1} parent=23 // pred_check
          %p151 = pneg %p62
        $region30: #{tpu_custom_call.1} parent=23 // pred_check_branch
          %153 = sbr.rel (%p151) target = $region32
        $region31: #{tpu_custom_call.1} parent=23 // pred_region
          %s154 = smul.u32 3, %s18
          %s156 = ssub.s32 384, 384
          %157 = vsyncadd %s147, %s156
          %s158 = smul.addr %s154, 128
          %s159 = scalar_lea.hbm %s1, %s158
          %s160 = sshll.u32 %s150, 4
          %s161 = int_to_ptr.vmem [resolvable:$true] %s160
          %166 = dma.vmem_to_hbm [thread:$0]  %s161, 384, %s159, %s147, 128, 128, 8
        $region32: #{tpu_custom_call.1} parent=23 // pred_fallthru
          _
      $region24: #{tpu_custom_call.1} parent=5 // pred_fallthru
        _
      %p167 = scmp.le.s32.totalorder 2, %s13
      // Predicated region
      $region33: #{tpu_custom_call.1} parent=5 // pred_check
        %p168 = pneg %p167
      $region34: #{tpu_custom_call.1} parent=5 // pred_check_branch
        %170 = sbr.rel (%p168) target = $region36
      $region35: #{tpu_custom_call.1} parent=5 // pred_region
        %s171 = ssub.s32 %s13, 2
        // Predicated region
        $region37: #{tpu_custom_call.1} parent=35 // pred_check
          %p172 = pneg %p68
        $region38: #{tpu_custom_call.1} parent=35 // pred_check_branch
          %174 = sbr.rel (%p172) target = $region40
        $region39: #{tpu_custom_call.1} parent=35 // pred_region
          %s175 = sand.u32 %s53, 1
          %s176 = scalar_lea.sflag [#allocation4], %s175
          %s177 = sand.u32 %s53, 1
          %s178 = smul.addr %s177, 24
          %s179 = scalar_lea.vmem [#allocation5], %s178
          %180 = dma.done %s176, 384
        $region40: #{tpu_custom_call.1} parent=35 // pred_fallthru
          _
      $region36: #{tpu_custom_call.1} parent=5 // pred_fallthru
        _
    $region6: #{tpu_custom_call.1} parent=1 // loop_footer
      %s17 = sadd.s32 1, %s13
    $region7: #{tpu_custom_call.1} parent=1 // loop_footer_branch
      %12 = sbr.rel target = $region3
    $region8: #{tpu_custom_call.1} parent=1 // loop_exit
      _
    %181 = vsyncpa [#allocation3], 1
    %s182 = scalar_lea.sflag [#allocation3], 1
    %183 = vsyncpa %s182, 1
    %184 = vsyncpa [#allocation4], 1
    %s185 = scalar_lea.sflag [#allocation4], 1
    %186 = vsyncpa %s185, 1

</llo_original>
